<compile_context>
chip_gen: v6e
topology: v6e:2x2x1
jax: 0.10.0
libtpu: 0.0.40
codegen_flags: <defaults>
</compile_context>

<pallas_src>
import functools

import jax
import jax.numpy as jnp
from jax import lax
from jax.experimental import pallas as pl
from jax.experimental.pallas import tpu as pltpu


def _rmsnorm_kernel(x_ref, w_ref, o_ref, *, eps, inv_h):
    # x_ref: (block_rows, H_pad) row tile; w_ref: (1, H_pad) weight (constant
    # index_map -> fetched once and kept VMEM-resident); o_ref: output tile.
    x = x_ref[...].astype(jnp.float32)                    # hidden.to(float32)
    # Padded lanes are zero, so sum over the padded axis and divide by the
    # true hidden size (== mean over the real lanes).
    var = jnp.sum(x * x, axis=-1, keepdims=True) * inv_h  # pow(2).mean(-1)
    xn = x * lax.rsqrt(var + eps)                         # rsqrt -> EUP slot
    # PyTorch parity: weight * normalized.to(input_dtype); result stored in
    # the (possibly promoted) output dtype.
    o_ref[...] = (w_ref[...] * xn.astype(x_ref.dtype)).astype(o_ref.dtype)


def _vmem_capacity_bytes():
    """Physical per-core VMEM (128 MiB v5e/v6e, 64 MiB v7x); safe fallback."""
    try:
        return int(pltpu.get_tpu_info().vmem_capacity_bytes)
    except Exception:
        return 64 << 20  # conservative (v7x-sized) -> safe on every generation


def rms_norm(hidden_states, weight, eps=1e-6, block_rows=None,
             out_in_input_dtype=False):
    """RMSNorm over the last dim. hidden_states: (..., H), weight: (H,)."""
    orig_shape = hidden_states.shape
    H = orig_shape[-1]
    x2d = hidden_states.reshape(-1, H)
    rows = x2d.shape[0]

    if out_in_input_dtype:
        # Fast path: keep the output in the activation dtype (halves HBM
        # writeback for bf16 activations with an f32 weight).
        weight = weight.astype(hidden_states.dtype)
        out_dtype = hidden_states.dtype
    else:
        # Strict PyTorch parity: `weight * normalized.to(input_dtype)` promotes.
        out_dtype = jnp.promote_types(hidden_states.dtype, weight.dtype)

    # Lane-dense padding of the hidden dim so stores are unmasked `vst`.
    # Only pad when the extra HBM traffic is <= ~1/8 of the real row; for tiny
    # H (e.g. 32) masked stores are cheaper than 4x traffic.
    H_pad = pl.cdiv(H, 128) * 128
    if H_pad != H and (H_pad - H) * 8 > H:
        H_pad = H
    if H_pad != H:
        x2d = jnp.pad(x2d, ((0, 0), (0, H_pad - H)))
        w2d = jnp.pad(weight.reshape(1, H), ((0, 0), (0, H_pad - H)))
    else:
        w2d = weight.reshape(1, H)

    in_itemsize = jnp.dtype(hidden_states.dtype).itemsize
    out_itemsize = jnp.dtype(out_dtype).itemsize
    w_itemsize = jnp.dtype(w2d.dtype).itemsize

    # Per row resident in VMEM: double-buffered input + output tiles plus ~two
    # f32 temporaries the body materializes (x in f32 and the normalized value).
    per_row = H_pad * (2 * in_itemsize + 2 * out_itemsize + 2 * 4)

    vmem_cap = _vmem_capacity_bytes()
    vmem_budget = vmem_cap * 3 // 8        # ~48 MiB on v5e/v6e, ~24 MiB on v7x
    num_cores = 2 if vmem_cap <= (65 << 20) else 1   # v7x: 2 TCs share the grid

    if block_rows is None:
        rows_rounded = pl.cdiv(rows, 8) * 8
        block_rows = max(8, min((vmem_budget // per_row) // 8 * 8, rows_rounded))
        if num_cores > 1 and rows_rounded > 8 * num_cores:
            # Keep at least `num_cores` grid steps so both TensorCores get
            # work; on single-TC chips one big step is best (grid is a loop).
            per_core_rows = pl.cdiv(pl.cdiv(rows, num_cores), 8) * 8
            block_rows = min(block_rows, max(8, per_core_rows))

    # Partial last block is masked by Pallas, so no divisibility requirement.
    grid = (pl.cdiv(rows, block_rows),)

    needed = block_rows * per_row + 2 * H_pad * w_itemsize
    vmem_limit = int(min(max(2 * needed, 32 << 20), vmem_cap * 3 // 4))
    vmem_limit = int(max(vmem_limit, needed + (2 << 20)))

    out = pl.pallas_call(
        functools.partial(_rmsnorm_kernel, eps=eps, inv_h=1.0 / H),
        out_shape=jax.ShapeDtypeStruct((rows, H_pad), out_dtype),
        grid_spec=pltpu.PrefetchScalarGridSpec(
            num_scalar_prefetch=0,
            grid=grid,
            in_specs=[
                pl.BlockSpec((block_rows, H_pad), lambda i: (i, 0)),
                pl.BlockSpec((1, H_pad), lambda i: (0, 0)),
            ],
            out_specs=pl.BlockSpec((block_rows, H_pad), lambda i: (i, 0)),
        ),
        compiler_params=pltpu.CompilerParams(
            dimension_semantics=("parallel",),
            vmem_limit_bytes=vmem_limit,
        ),
    )(x2d, w2d)

    if H_pad != H:
        out = out[:, :H]
    return out.reshape(orig_shape)


def _ref_rms_norm(h, w, eps):
    hf = h.astype(jnp.float32)
    var = jnp.mean(hf * hf, axis=-1, keepdims=True)
    return w * (hf * lax.rsqrt(var + eps)).astype(h.dtype)


if __name__ == "__main__":
    batch, seq, hidden = 2, 8, 32
    key = jax.random.PRNGKey(0)
    x = jax.random.normal(key, (batch, seq, hidden), dtype=jnp.float32)

    # Module init: self.weight = nn.Parameter(torch.ones(hidden_size))
    weight = jnp.ones((hidden,), dtype=jnp.float32)

    y = rms_norm(x, weight, eps=1e-6)
    jax.block_until_ready(y)

    ref = _ref_rms_norm(x, weight, 1e-6)
    assert y.shape == x.shape
    assert y.dtype == ref.dtype
    assert jnp.allclose(y, ref, atol=1e-5, rtol=1e-5)

    # Exercise the lane-dense padding path (H not a multiple of 128).
    x2 = jax.random.normal(jax.random.PRNGKey(1), (16, 1040), dtype=jnp.float32)
    w2 = jax.random.normal(jax.random.PRNGKey(2), (1040,), dtype=jnp.float32)
    y2 = rms_norm(x2, w2, eps=1e-6)
    jax.block_until_ready(y2)
    ref2 = _ref_rms_norm(x2, w2, 1e-6)
    assert y2.shape == x2.shape
    assert jnp.allclose(y2, ref2, atol=1e-4, rtol=1e-4)

    print("KERNEL_OK")
</pallas_src>

<mosaic_0001>
module attributes {stable_mosaic.version = 11 : i64} {
  func.func @_rmsnorm_kernel(%arg0: i32, %arg1: memref<16x32xf32, #tpu.memory_space<vmem>>, %arg2: memref<1x32xf32, #tpu.memory_space<vmem>>, %arg3: memref<16x32xf32, #tpu.memory_space<vmem>>) attributes {dimension_semantics = [#tpu.dimension_semantics<parallel>], iteration_bounds = array<i64: 1>, scalar_prefetch = 0 : i64, scratch_operands = 0 : i64, tpu.core_type = #tpu.core_type<tc>, window_params = [{transform_indices = @transform_0, window_bounds = array<i64: 16, 32>}, {pipeline_mode = #tpu.pipeline_mode<synchronous>, transform_indices = @transform_1, window_bounds = array<i64: 1, 32>}, {transform_indices = @transform_2, window_bounds = array<i64: 16, 32>}]} {
    %c0 = arith.constant 0 : index
    %c0_0 = arith.constant 0 : index
    %0 = vector.load %arg1[%c0, %c0_0] : memref<16x32xf32, #tpu.memory_space<vmem>>, vector<16x32xf32>
    %1 = arith.mulf %0, %0 : vector<16x32xf32>
    %cst = arith.constant dense<0.000000e+00> : vector<16xf32>
    %2 = vector.multi_reduction <add>, %1, %cst [1] : vector<16x32xf32> to vector<16xf32>
    %3 = vector.shape_cast %2 : vector<16xf32> to vector<16x1xf32>
    %cst_1 = arith.constant 3.125000e-02 : f32
    %4 = vector.broadcast %cst_1 : f32 to vector<16x1xf32>
    %5 = arith.mulf %3, %4 : vector<16x1xf32>
    %cst_2 = arith.constant 9.99999997E-7 : f32
    %6 = vector.broadcast %cst_2 : f32 to vector<16x1xf32>
    %7 = arith.addf %5, %6 : vector<16x1xf32>
    %8 = math.rsqrt %7 : vector<16x1xf32>
    %9 = vector.broadcast %8 : vector<16x1xf32> to vector<16x32xf32>
    %10 = arith.mulf %0, %9 : vector<16x32xf32>
    %c0_3 = arith.constant 0 : index
    %c0_4 = arith.constant 0 : index
    %11 = vector.load %arg2[%c0_3, %c0_4] : memref<1x32xf32, #tpu.memory_space<vmem>>, vector<1x32xf32>
    %12 = vector.broadcast %11 : vector<1x32xf32> to vector<16x32xf32>
    %13 = arith.mulf %12, %10 : vector<16x32xf32>
    %c0_5 = arith.constant 0 : index
    %c0_6 = arith.constant 0 : index
    %14 = vector.load %arg3[%c0_5, %c0_6] : memref<16x32xf32, #tpu.memory_space<vmem>>, vector<16x32xf32>
    tpu.vector_store %arg3[%c0_5, %c0_6], %13 {strides = array<i32>} : memref<16x32xf32, #tpu.memory_space<vmem>>, vector<16x32xf32>,
    return
  }
  func.func @transform_0(%arg0: i32) -> (i32, i32) {
    %c0_i32 = arith.constant 0 : i32
    %c0_i32_0 = arith.constant 0 : i32
    return %arg0, %c0_i32 : i32, i32
  }
  func.func @transform_1(%arg0: i32) -> (i32, i32) {
    %c0_i32 = arith.constant 0 : i32
    %c0_i32_0 = arith.constant 0 : i32
    %c0_i32_1 = arith.constant 0 : i32
    return %c0_i32, %c0_i32_0 : i32, i32
  }
  func.func @transform_2(%arg0: i32) -> (i32, i32) {
    %c0_i32 = arith.constant 0 : i32
    %c0_i32_0 = arith.constant 0 : i32
    return %arg0, %c0_i32 : i32, i32
  }
}

</mosaic_0001>

<llo_original>
// kernel: tpu_custom_call.1
$region0: #{tpu_custom_call.1}
  #allocation0 [shape = 'u32[]', space=smem, size = 0x4, offset = 0x4, fixed_abs, tag = 'smem constant byte address 0x4 - core index']
  #allocation1 [shape = 'u32[144,128]{1,0:T(1,128)}', space=vmem, size = 0x12000, scoped, tag = 'internal scratch']
  %s0 = inlined_call_operand.hbm [shape: f32[16,32], index: 0, kind: input, shape index: {}]
  %s1 = inlined_call_operand.vmem [shape: f32[1,32], index: 1, kind: input, shape index: {}]
  %s2 = inlined_call_operand.hbm [shape: f32[16,32], index: 2, kind: output, shape index: {}]
  %s3 = sld [smem:[#allocation0]]
  $region22: #{tpu_custom_call.1} parent=0
    _
  %s5 = ssub.s32 1, %s3
  %s6 = scalar_select 0, %s5, %s3
  $region1: #{tpu_custom_call.1} parent=0
    #allocation2 [shape = 'u8[8192]{0}', space=vmem, size = 0x2000, scoped, tag = 'input window, operand 0, single buffered']
    #allocation3 [shape = 's32[1]{0}', space=sflag, size = 0x4, scoped, tag = 'scoped memory for tpu_custom_call.1']
    #allocation4 [shape = 's32[1]{0}', space=sflag, size = 0x4, scoped, tag = 'scoped memory for tpu_custom_call.1']
    #allocation5 [shape = 'u8[8192]{0}', space=vmem, size = 0x2000, scoped, tag = 'output window, operand 0, single buffered']
    %7 = vsyncpa [#allocation3], 0
    %8 = vsyncpa [#allocation4], 0
    // Predicated region
    $region2: #{tpu_custom_call.1} parent=1 // pred_check
      _
    $region3: #{tpu_custom_call.1} parent=1 // pred_check_branch
      %10 = sbr.rel (0) target = $region5
    $region4: #{tpu_custom_call.1} parent=1 // pred_region
      %s12 = ssub.s32 256, 256
      %13 = vsyncadd [#allocation3], %s12
      %s14 = sshll.u32 [#allocation2], 4
      %s15 = int_to_ptr.vmem [resolvable:$true] %s14
      %20 = dma.hbm_to_vmem [thread:$0]  %s0, 256, %s15, [#allocation3], 128, 128, 8
    $region5: #{tpu_custom_call.1} parent=1 // pred_fallthru
      _
    // Predicated region
    $region6: #{tpu_custom_call.1} parent=1 // pred_check
      _
    $region7: #{tpu_custom_call.1} parent=1 // pred_check_branch
      %22 = sbr.rel (0) target = $region9
    $region8: #{tpu_custom_call.1} parent=1 // pred_region
      _
    $region9: #{tpu_custom_call.1} parent=1 // pred_fallthru
      _
    // Predicated region
    $region10: #{tpu_custom_call.1} parent=1 // pred_check
      _
    $region11: #{tpu_custom_call.1} parent=1 // pred_check_branch
      %24 = sbr.rel (0) target = $region13
    $region12: #{tpu_custom_call.1} parent=1 // pred_region
      %25 = dma.done [#allocation3], 256
    $region13: #{tpu_custom_call.1} parent=1 // pred_fallthru
      _
    %v26 = vld [vmem:[#allocation2] sm:$0xff]
    %v27 = vld [vmem:[#allocation2 + $0x8] sm:$0xff]
    %v28 = vmul.f32 %v26, %v26
    %v29 = vmul.f32 %v27, %v27
    %vm30 = vcmask 261120
    %v31 = vsel %vm30, %v28, 0.0
    %32 = vadd.xlane.f32.xlu0 %v31
    %v33 = vpop.xlane.xlu0 %32
    %v34 = vsel %vm30, %v29, 0.0
    %35 = vadd.xlane.f32.xlu0 %v34
    %v36 = vpop.xlane.xlu0 %35
    %v37 = vmul.f32 %v33, 0.03125
    %v38 = vmul.f32 %v36, 0.03125
    %v39 = vadd.f32 %v37, 1e-06
    %v40 = vadd.f32 %v38, 1e-06
    %v41 = vrsqrt.pop %v39
    %v42 = vrsqrt.pop %v40
    %v43 = vmul.f32 %v26, %v41
    %v44 = vmul.f32 %v27, %v42
    %v45 = vld [vmem:[%s1] sm:$0x1]
    %v47 = vlaneseq
    %v48 = vshrl.u32 %v47, 7
    %v49 = vsub.s32 0, %v48
    %v50 = vrot.slane %v45, %v49
    %v52 = vmul.f32 %v50, %v43
    %v53 = vmul.f32 %v50, %v44
    %54 = vst.msk [vmem:[#allocation5] sm:$0xff] %vm30, %v52
    %55 = vst.msk [vmem:[#allocation5 + $0x8] sm:$0xff] %vm30, %v53
    // Predicated region
    $region14: #{tpu_custom_call.1} parent=1 // pred_check
      _
    $region15: #{tpu_custom_call.1} parent=1 // pred_check_branch
      %57 = sbr.rel (0) target = $region17
    $region16: #{tpu_custom_call.1} parent=1 // pred_region
      %s59 = ssub.s32 256, 256
      %60 = vsyncadd [#allocation4], %s59
      %s61 = sshll.u32 [#allocation5], 4
      %s62 = int_to_ptr.vmem [resolvable:$true] %s61
      %67 = dma.vmem_to_hbm [thread:$0]  %s62, 256, %s2, [#allocation4], 128, 128, 8
    $region17: #{tpu_custom_call.1} parent=1 // pred_fallthru
      _
    // Predicated region
    $region18: #{tpu_custom_call.1} parent=1 // pred_check
      _
    $region19: #{tpu_custom_call.1} parent=1 // pred_check_branch
      %69 = sbr.rel (0) target = $region21
    $region20: #{tpu_custom_call.1} parent=1 // pred_region
      %70 = dma.done [#allocation4], 256
    $region21: #{tpu_custom_call.1} parent=1 // pred_fallthru
      _
    %71 = vsyncpa [#allocation3], 1
    %72 = vsyncpa [#allocation4], 1

</llo_original>
